<compile_context>
chip_gen: v7x
topology: tpu7x:2x2x1
jax: 0.10.0
libtpu: 0.0.40
codegen_flags: <defaults>
</compile_context>

<pallas_src>
import functools

import jax
import jax.numpy as jnp
from jax.experimental import pallas as pl
from jax.experimental.pallas import tpu as pltpu


# ---- packed-parameter layout (row offsets 8-aligned, cols padded to 256) ----
_PCOLS = 256
_PROWS = 320
_ROW_W1, _ROW_W2, _ROW_W3, _ROW_WH = 0, 8, 40, 272
_ROW_B1, _ROW_B2, _ROW_B3, _ROW_BH = 288, 296, 304, 312


def _mlp_kernel(x_ref, p_ref, out_ref, *, n_gaussians):
    G = n_gaussians
    x = x_ref[...]                                           # (B, 5) f32

    # Static, 8-aligned slices of the packed parameter buffer (weights are
    # stored (in, out) so every projection is a plain A @ W matmul).
    w1 = p_ref[_ROW_W1:_ROW_W1 + 5, 0:25]
    w2 = p_ref[_ROW_W2:_ROW_W2 + 25, 0:225]
    w3 = p_ref[_ROW_W3:_ROW_W3 + 225, 0:9]
    wh = p_ref[_ROW_WH:_ROW_WH + 9, 0:3 * G]                 # [wpi | wmu | wsig]
    b1 = p_ref[_ROW_B1:_ROW_B1 + 1, 0:25]
    b2 = p_ref[_ROW_B2:_ROW_B2 + 1, 0:225]
    b3 = p_ref[_ROW_B3:_ROW_B3 + 1, 0:9]
    bh = p_ref[_ROW_BH:_ROW_BH + 1, 0:3 * G]                 # [bpi | bmu | bsig]

    # mlp_call: Linear(5,25) -> ReLU -> Linear(25,225) -> ReLU
    #           -> Linear(225,9) -> Tanh
    h = jnp.maximum(jnp.dot(x, w1, preferred_element_type=jnp.float32) + b1, 0.0)
    h = jnp.maximum(jnp.dot(h, w2, preferred_element_type=jnp.float32) + b2, 0.0)
    h = jnp.tanh(jnp.dot(h, w3, preferred_element_type=jnp.float32) + b3)

    # Fused head projection: one (B,9)@(9,3G) matmul covering pi | mu | sigma.
    heads = jnp.dot(h, wh, preferred_element_type=jnp.float32) + bh   # (B, 3G)

    # Column masks over the fused head output (no lane slicing / concat).
    col = jax.lax.broadcasted_iota(jnp.int32, heads.shape, 1)
    pi_cols = col < G
    sig_cols = col >= 2 * G

    # pi: softmax over the gaussian axis, restricted to the pi columns.
    neg_big = jnp.float32(-1e30)
    pi_logits = jnp.where(pi_cols, heads, neg_big)
    m = jnp.max(pi_logits, axis=1, keepdims=True)
    e = jnp.exp(jnp.where(pi_cols, heads - m, neg_big))       # exactly 0 off pi cols
    denom = jnp.sum(e, axis=1, keepdims=True)
    pi_vals = e * pl.reciprocal(denom, approx=True)

    # sigma: exp (nonnegative by construction); mu: identity.
    # TODO(synk): torch._assert(sigma >= 0) is a runtime assert with no
    # kernel-side equivalent; exp() is nonnegative by construction so the
    # check is vacuous and dropped.
    combined = jnp.where(pi_cols, pi_vals,
                         jnp.where(sig_cols, jnp.exp(heads), heads))

    # Single batch-mean sublane reduce + single (1, 3G) store (one writeback DMA).
    out_ref[...] = jnp.mean(combined, axis=0, keepdims=True)


@functools.partial(jax.jit, static_argnames=("n_gaussians",))
def mlp_forward(x, packed_params, *, n_gaussians):
    """x: (B, 1, 5) or (B, 5). Returns (pi, mu, sigma), each (n_gaussians,)."""
    G = n_gaussians
    x2d = x.reshape(-1, 5).astype(jnp.float32)   # robust torch.squeeze(x) replacement

    vmem = pl.BlockSpec(memory_space=pltpu.MemorySpace.VMEM)
    out = pl.pallas_call(
        functools.partial(_mlp_kernel, n_gaussians=G),
        out_shape=jax.ShapeDtypeStruct((1, 3 * G), jnp.float32),
        in_specs=[vmem, vmem],
        out_specs=vmem,
    )(x2d, packed_params)
    return out[0, 0:G], out[0, G:2 * G], out[0, 2 * G:3 * G]


def init_params(key, n_gaussians):
    """Deterministic init matching the torch layer shapes.
    Weights stored as (in, out); biases as (1, out)."""
    dims = [("w1", "b1", 5, 25),
            ("w2", "b2", 25, 225),
            ("w3", "b3", 225, 9),
            ("wpi", "bpi", 9, n_gaussians),
            ("wmu", "bmu", 9, n_gaussians),
            ("wsig", "bsig", 9, n_gaussians)]
    params = {}
    for wname, bname, fan_in, fan_out in dims:
        key, kw, kb = jax.random.split(key, 3)
        bound = 1.0 / (fan_in ** 0.5)
        params[wname] = jax.random.uniform(
            kw, (fan_in, fan_out), jnp.float32, -bound, bound)
        params[bname] = jax.random.uniform(
            kb, (1, fan_out), jnp.float32, -bound, bound)
    return params


def pack_params(params, n_gaussians):
    """Pack all weights/biases into a single (320, 256) f32 buffer (done once)."""
    del n_gaussians  # layout is independent of G as long as 3G <= _PCOLS
    wh = jnp.concatenate([params["wpi"], params["wmu"], params["wsig"]], axis=1)
    bh = jnp.concatenate([params["bpi"], params["bmu"], params["bsig"]], axis=1)
    buf = jnp.zeros((_PROWS, _PCOLS), jnp.float32)

    def put(b, arr, row):
        r, c = arr.shape
        return b.at[row:row + r, 0:c].set(arr)

    buf = put(buf, params["w1"], _ROW_W1)
    buf = put(buf, params["w2"], _ROW_W2)
    buf = put(buf, params["w3"], _ROW_W3)
    buf = put(buf, wh, _ROW_WH)
    buf = put(buf, params["b1"], _ROW_B1)
    buf = put(buf, params["b2"], _ROW_B2)
    buf = put(buf, params["b3"], _ROW_B3)
    buf = put(buf, bh, _ROW_BH)
    return buf


def _reference_forward(x, params):
    x = x.reshape(-1, 5)
    h = jnp.maximum(x @ params["w1"] + params["b1"], 0.0)
    h = jnp.maximum(h @ params["w2"] + params["b2"], 0.0)
    h = jnp.tanh(h @ params["w3"] + params["b3"])
    pi = jnp.mean(jax.nn.softmax(h @ params["wpi"] + params["bpi"], axis=1), axis=0)
    mu = jnp.mean(h @ params["wmu"] + params["bmu"], axis=0)
    sigma = jnp.mean(jnp.exp(h @ params["wsig"] + params["bsig"]), axis=0)
    return pi, mu, sigma


if __name__ == "__main__":
    n_gaussians = 4
    batch = 8

    key = jax.random.PRNGKey(0)
    key, kx, kp = jax.random.split(key, 3)
    # Input with a squeezable singleton dim, like typical (B, 1, 5) torch inputs.
    x = jax.random.normal(kx, (batch, 1, 5), jnp.float32)
    params = init_params(kp, n_gaussians)
    packed = pack_params(params, n_gaussians)

    pi, mu, sigma = mlp_forward(x, packed, n_gaussians=n_gaussians)
    jax.block_until_ready((pi, mu, sigma))

    pi_ref, mu_ref, sigma_ref = _reference_forward(x, params)
    # pi uses the EUP approximate reciprocal in the softmax -> slightly looser tol.
    assert jnp.allclose(pi, pi_ref, atol=1e-3, rtol=1e-3), (pi, pi_ref)
    assert jnp.allclose(mu, mu_ref, atol=1e-5, rtol=1e-5), (mu, mu_ref)
    assert jnp.allclose(sigma, sigma_ref, atol=1e-5, rtol=1e-5), (sigma, sigma_ref)
    assert pi.shape == (n_gaussians,)
    assert mu.shape == (n_gaussians,)
    assert sigma.shape == (n_gaussians,)

    print("KERNEL_OK")
</pallas_src>

<mosaic_0001>
module attributes {stable_mosaic.version = 11 : i64} {
  func.func @_mlp_kernel(%arg0: memref<8x5xf32, #tpu.memory_space<vmem>>, %arg1: memref<320x256xf32, #tpu.memory_space<vmem>>, %arg2: memref<1x12xf32, #tpu.memory_space<vmem>>) attributes {dimension_semantics = [], scalar_prefetch = 0 : i64, scratch_operands = 0 : i64, tpu.core_type = #tpu.core_type<tc>} {
    %c0 = arith.constant 0 : index
    %c0_0 = arith.constant 0 : index
    %0 = vector.load %arg0[%c0, %c0_0] : memref<8x5xf32, #tpu.memory_space<vmem>>, vector<8x5xf32>
    %c0_1 = arith.constant 0 : index
    %c0_2 = arith.constant 0 : index
    %1 = vector.load %arg1[%c0_1, %c0_2] : memref<320x256xf32, #tpu.memory_space<vmem>>, vector<5x25xf32>
    %c8 = arith.constant 8 : index
    %c0_3 = arith.constant 0 : index
    %2 = vector.load %arg1[%c8, %c0_3] : memref<320x256xf32, #tpu.memory_space<vmem>>, vector<25x225xf32>
    %c40 = arith.constant 40 : index
    %c0_4 = arith.constant 0 : index
    %3 = vector.load %arg1[%c40, %c0_4] : memref<320x256xf32, #tpu.memory_space<vmem>>, vector<225x9xf32>
    %c272 = arith.constant 272 : index
    %c0_5 = arith.constant 0 : index
    %4 = vector.load %arg1[%c272, %c0_5] : memref<320x256xf32, #tpu.memory_space<vmem>>, vector<9x12xf32>
    %c288 = arith.constant 288 : index
    %c0_6 = arith.constant 0 : index
    %5 = vector.load %arg1[%c288, %c0_6] : memref<320x256xf32, #tpu.memory_space<vmem>>, vector<1x25xf32>
    %c296 = arith.constant 296 : index
    %c0_7 = arith.constant 0 : index
    %6 = vector.load %arg1[%c296, %c0_7] : memref<320x256xf32, #tpu.memory_space<vmem>>, vector<1x225xf32>
    %c304 = arith.constant 304 : index
    %c0_8 = arith.constant 0 : index
    %7 = vector.load %arg1[%c304, %c0_8] : memref<320x256xf32, #tpu.memory_space<vmem>>, vector<1x9xf32>
    %c312 = arith.constant 312 : index
    %c0_9 = arith.constant 0 : index
    %8 = vector.load %arg1[%c312, %c0_9] : memref<320x256xf32, #tpu.memory_space<vmem>>, vector<1x12xf32>
    %cst = arith.constant dense<0.000000e+00> : vector<8x25xf32>
    %9 = tpu.matmul %0, %1, %cst {dimension_numbers = #tpu.dot_dimension_numbers<[1], [0], [0], [1], [0, 0, 1, 1], [], []>} : vector<8x5xf32>, vector<5x25xf32>, vector<8x25xf32> -> vector<8x25xf32>
    %10 = vector.broadcast %5 : vector<1x25xf32> to vector<8x25xf32>
    %11 = arith.addf %9, %10 : vector<8x25xf32>
    %cst_10 = arith.constant 0.000000e+00 : f32
    %12 = vector.broadcast %cst_10 : f32 to vector<8x25xf32>
    %13 = arith.maximumf %11, %12 : vector<8x25xf32>
    %cst_11 = arith.constant dense<0.000000e+00> : vector<8x225xf32>
    %14 = tpu.matmul %13, %2, %cst_11 {dimension_numbers = #tpu.dot_dimension_numbers<[1], [0], [0], [1], [0, 0, 1, 1], [], []>} : vector<8x25xf32>, vector<25x225xf32>, vector<8x225xf32> -> vector<8x225xf32>
    %15 = vector.broadcast %6 : vector<1x225xf32> to vector<8x225xf32>
    %16 = arith.addf %14, %15 : vector<8x225xf32>
    %cst_12 = arith.constant 0.000000e+00 : f32
    %17 = vector.broadcast %cst_12 : f32 to vector<8x225xf32>
    %18 = arith.maximumf %16, %17 : vector<8x225xf32>
    %cst_13 = arith.constant dense<0.000000e+00> : vector<8x9xf32>
    %19 = tpu.matmul %18, %3, %cst_13 {dimension_numbers = #tpu.dot_dimension_numbers<[1], [0], [0], [1], [0, 0, 1, 1], [], []>} : vector<8x225xf32>, vector<225x9xf32>, vector<8x9xf32> -> vector<8x9xf32>
    %20 = vector.broadcast %7 : vector<1x9xf32> to vector<8x9xf32>
    %21 = arith.addf %19, %20 : vector<8x9xf32>
    %22 = math.tanh %21 : vector<8x9xf32>
    %cst_14 = arith.constant dense<0.000000e+00> : vector<8x12xf32>
    %23 = tpu.matmul %22, %4, %cst_14 {dimension_numbers = #tpu.dot_dimension_numbers<[1], [0], [0], [1], [0, 0, 1, 1], [], []>} : vector<8x9xf32>, vector<9x12xf32>, vector<8x12xf32> -> vector<8x12xf32>
    %24 = vector.broadcast %8 : vector<1x12xf32> to vector<8x12xf32>
    %25 = arith.addf %23, %24 : vector<8x12xf32>
    %26 = tpu.iota {dimensions = array<i32: 1>} : vector<8x12xi32>
    %c4_i32 = arith.constant 4 : i32
    %27 = vector.broadcast %c4_i32 : i32 to vector<8x12xi32>
    %28 = arith.cmpi slt, %26, %27 : vector<8x12xi32>
    %c8_i32 = arith.constant 8 : i32
    %29 = vector.broadcast %c8_i32 : i32 to vector<8x12xi32>
    %30 = arith.cmpi sge, %26, %29 : vector<8x12xi32>
    %cst_15 = arith.constant -1.000000e+30 : f32
    %31 = vector.broadcast %cst_15 : f32 to vector<8x12xf32>
    %32 = arith.select %28, %25, %31 : vector<8x12xi1>, vector<8x12xf32>
    %cst_16 = arith.constant dense<0xFF800000> : vector<8xf32>
    %33 = vector.multi_reduction <maximumf>, %32, %cst_16 [1] : vector<8x12xf32> to vector<8xf32>
    %34 = vector.shape_cast %33 : vector<8xf32> to vector<8x1xf32>
    %35 = vector.broadcast %34 : vector<8x1xf32> to vector<8x12xf32>
    %36 = arith.subf %25, %35 : vector<8x12xf32>
    %cst_17 = arith.constant -1.000000e+30 : f32
    %37 = vector.broadcast %cst_17 : f32 to vector<8x12xf32>
    %38 = arith.select %28, %36, %37 : vector<8x12xi1>, vector<8x12xf32>
    %39 = math.exp %38 : vector<8x12xf32>
    %cst_18 = arith.constant dense<0.000000e+00> : vector<8xf32>
    %40 = vector.multi_reduction <add>, %39, %cst_18 [1] : vector<8x12xf32> to vector<8xf32>
    %41 = vector.shape_cast %40 : vector<8xf32> to vector<8x1xf32>
    %42 = tpu.reciprocal %41 {approx = true} : vector<8x1xf32> -> vector<8x1xf32>
    %43 = vector.broadcast %42 : vector<8x1xf32> to vector<8x12xf32>
    %44 = arith.mulf %39, %43 : vector<8x12xf32>
    %45 = math.exp %25 : vector<8x12xf32>
    %46 = arith.select %30, %45, %25 : vector<8x12xi1>, vector<8x12xf32>
    %47 = arith.select %28, %44, %46 : vector<8x12xi1>, vector<8x12xf32>
    %cst_19 = arith.constant dense<0.000000e+00> : vector<12xf32>
    %48 = vector.multi_reduction <add>, %47, %cst_19 [0] : vector<8x12xf32> to vector<12xf32>
    %49 = vector.shape_cast %48 : vector<12xf32> to vector<1x12xf32>
    %cst_20 = arith.constant 8.000000e+00 : f32
    %50 = vector.broadcast %cst_20 : f32 to vector<1x12xf32>
    %51 = arith.divf %49, %50 : vector<1x12xf32>
    %c0_21 = arith.constant 0 : index
    %c0_22 = arith.constant 0 : index
    %52 = vector.load %arg2[%c0_21, %c0_22] : memref<1x12xf32, #tpu.memory_space<vmem>>, vector<1x12xf32>
    tpu.vector_store %arg2[%c0_21, %c0_22], %51 {strides = array<i32>} : memref<1x12xf32, #tpu.memory_space<vmem>>, vector<1x12xf32>,
    return
  }
}

</mosaic_0001>

<llo_original>
// kernel: mlp_forward.1
$region0: #{mlp_forward.1}
  #allocation0 [shape = 'u32[]', space=smem, size = 0x4, offset = 0x4, fixed_abs, tag = 'smem constant byte address 0x4 - core index']
  #allocation1 [shape = 'u32[144,128]{1,0:T(1,128)}', space=vmem, size = 0x12000, scoped, tag = 'internal scratch']
  %s0 = inlined_call_operand.vmem [shape: f32[8,5], index: 0, kind: input, shape index: {}]
  %s1 = inlined_call_operand.hbm [shape: f32[320,256], index: 1, kind: input, shape index: {}]
  %s2 = inlined_call_operand.vmem [shape: f32[1,12], index: 2, kind: output, shape index: {}]
  %s3 = sld [smem:[#allocation0]]
  $region22: #{mlp_forward.1} parent=0
    _
  %s5 = ssub.s32 1, %s3
  %s6 = scalar_select 0, %s5, %s3
  $region1: #{mlp_forward.1} parent=0
    #allocation2 [shape = 'u8[327680]{0}', space=vmem, size = 0x50000, scoped, tag = 'input window, operand 1, single buffered']
    #allocation3 [shape = 's32[1]{0}', space=sflag, size = 0x4, scoped, tag = 'scoped memory for mlp_forward.1']
    %7 = vsyncpa [#allocation3], 0
    // Predicated region
    $region2: #{mlp_forward.1} parent=1 // pred_check
      _
    $region3: #{mlp_forward.1} parent=1 // pred_check_branch
      %9 = sbr.rel (0) target = $region5
    $region4: #{mlp_forward.1} parent=1 // pred_region
      _
    $region5: #{mlp_forward.1} parent=1 // pred_fallthru
      _
    // Predicated region
    $region6: #{mlp_forward.1} parent=1 // pred_check
      _
    $region7: #{mlp_forward.1} parent=1 // pred_check_branch
      %11 = sbr.rel (0) target = $region9
    $region8: #{mlp_forward.1} parent=1 // pred_region
      %s13 = ssub.s32 10240, 10240
      %14 = vsyncadd [#allocation3], %s13
      %s15 = sshll.u32 [#allocation2], 4
      %s16 = int_to_ptr.vmem [resolvable:$true] %s15
      %21 = dma.hbm_to_vmem [thread:$0]  %s1, 10240, %s16, [#allocation3], 256, 256, 16
    $region9: #{mlp_forward.1} parent=1 // pred_fallthru
      _
    // Predicated region
    $region10: #{mlp_forward.1} parent=1 // pred_check
      _
    $region11: #{mlp_forward.1} parent=1 // pred_check_branch
      %23 = sbr.rel (0) target = $region13
    $region12: #{mlp_forward.1} parent=1 // pred_region
      %24 = dma.done [#allocation3], 10240
    $region13: #{mlp_forward.1} parent=1 // pred_fallthru
      _
    %v25 = vld [vmem:[%s0] sm:$0xff]
    %v26 = vld [vmem:[#allocation2] sm:$0x1f]
    %v27 = vld [vmem:[#allocation2 + $0x10] sm:$0xff]
    %v28 = vld [vmem:[#allocation2 + $0x18] sm:$0xff]
    %v29 = vld [vmem:[#allocation2 + $0x20] sm:$0xff]
    %v30 = vld [vmem:[#allocation2 + $0x28] sm:$0xff]
    %v31 = vld [vmem:[#allocation2 + $0x30] sm:$0xff]
    %v32 = vld [vmem:[#allocation2 + $0x38] sm:$0xff]
    %v33 = vld [vmem:[#allocation2 + $0x40] sm:$0x1]
    %v34 = vld [vmem:[#allocation2 + $0x48] sm:$0x1]
    %v35 = vld [vmem:[#allocation2 + $0x50] sm:$0xff]
    %v36 = vld [vmem:[#allocation2 + $0x60] sm:$0xff]
    %v37 = vld [vmem:[#allocation2 + $0x70] sm:$0xff]
    %v38 = vld [vmem:[#allocation2 + $0x80] sm:$0xff]
    %v39 = vld [vmem:[#allocation2 + $0x90] sm:$0xff]
    %v40 = vld [vmem:[#allocation2 + $0xa0] sm:$0xff]
    %v41 = vld [vmem:[#allocation2 + $0xb0] sm:$0xff]
    %v42 = vld [vmem:[#allocation2 + $0xc0] sm:$0xff]
    %v43 = vld [vmem:[#allocation2 + $0xd0] sm:$0xff]
    %v44 = vld [vmem:[#allocation2 + $0xe0] sm:$0xff]
    %v45 = vld [vmem:[#allocation2 + $0xf0] sm:$0xff]
    %v46 = vld [vmem:[#allocation2 + $0x100] sm:$0xff]
    %v47 = vld [vmem:[#allocation2 + $0x110] sm:$0xff]
    %v48 = vld [vmem:[#allocation2 + $0x120] sm:$0xff]
    %v49 = vld [vmem:[#allocation2 + $0x130] sm:$0xff]
    %v50 = vld [vmem:[#allocation2 + $0x140] sm:$0xff]
    %v51 = vld [vmem:[#allocation2 + $0x150] sm:$0xff]
    %v52 = vld [vmem:[#allocation2 + $0x160] sm:$0xff]
    %v53 = vld [vmem:[#allocation2 + $0x170] sm:$0xff]
    %v54 = vld [vmem:[#allocation2 + $0x180] sm:$0xff]
    %v55 = vld [vmem:[#allocation2 + $0x190] sm:$0xff]
    %v56 = vld [vmem:[#allocation2 + $0x1a0] sm:$0xff]
    %v57 = vld [vmem:[#allocation2 + $0x1b0] sm:$0xff]
    %v58 = vld [vmem:[#allocation2 + $0x1c0] sm:$0xff]
    %v59 = vld [vmem:[#allocation2 + $0x1d0] sm:$0xff]
    %v60 = vld [vmem:[#allocation2 + $0x1e0] sm:$0xff]
    %v61 = vld [vmem:[#allocation2 + $0x1f0] sm:$0xff]
    %v62 = vld [vmem:[#allocation2 + $0x200] sm:$0xff]
    %v63 = vld [vmem:[#allocation2 + $0x210] sm:$0x1]
    %v64 = vld [vmem:[#allocation2 + $0x220] sm:$0xff]
    %v65 = vld [vmem:[#allocation2 + $0x230] sm:$0x1]
    %v66 = vld [vmem:[#allocation2 + $0x240] ss:$0 sm:$0xff]
    %s67 = scalar_lea.vmem [#allocation2], 592
    %v68 = vld [vmem:[%s67] ss:$8 sm:$0x3]
    %v69 = vld [vmem:[#allocation2 + $0x260] ss:$0 sm:$0xff]
    %v70 = vld [vmem:[#allocation2 + $0x270] ss:$0 sm:$0xff]
    %vm71 = vcmask 39936
    %v73 = vsel %vm71, %v25, 0
    %vm75 = vcmask 1044480
    %v77 = vsel %vm75, %v26, 0
    %79 = vmatprep.subr.mxu0 0.0
    %80 = vmatpush1.msra.mxu0 %v77
    %81 = vmatprep.subr.mxu0 0.0
    %82 = vmatpush1.msra.mxu0 0.0
    %83 = vmatprep.subr.mxu0 0.0
    %84 = vmatpush1.msra.mxu0 0.0
    %85 = vmatprep.subr.mxu0 0.0
    %86 = vmatpush1.msra.mxu0 0.0
    %87 = vmatprep.subr.mxu0 0.0
    %88 = vmatpush1.msra.mxu0 0.0
    %89 = vmatprep.subr.mxu0 0.0
    %90 = vmatpush1.msra.mxu0 0.0
    %91 = vmatprep.subr.mxu0 0.0
    %92 = vmatpush1.msra.mxu0 0.0
    %93 = vmatprep.subr.mxu0 0.0
    %94 = vmatpush1.msra.mxu0 0.0
    %95 = vmatprep.subr.mxu0 0.0
    %96 = vmatpush1.msra.mxu0 0.0
    %97 = vmatprep.subr.mxu0 0.0
    %98 = vmatpush1.msra.mxu0 0.0
    %99 = vmatprep.subr.mxu0 0.0
    %100 = vmatpush1.msra.mxu0 0.0
    %101 = vmatprep.subr.mxu0 0.0
    %102 = vmatpush1.msra.mxu0 0.0
    %103 = vmatprep.subr.mxu0 0.0
    %104 = vmatpush1.msra.mxu0 0.0
    %105 = vmatprep.subr.mxu0 0.0
    %106 = vmatpush1.msra.mxu0 0.0
    %107 = vmatprep.subr.mxu0 0.0
    %108 = vmatpush1.msra.mxu0 0.0
    %109 = vmatprep.subr.mxu0 0.0
    %110 = vmatpush1.msra.mxu0 0.0
    %111 = vmatprep.subr.mxu0 0.0
    %112 = vmatpush1.msra.mxu0 0.0
    %113 = vmatprep.subr.mxu0 0.0
    %114 = vmatpush1.msra.mxu0 0.0
    %115 = vmatprep.subr.mxu0 0.0
    %116 = vmatpush1.msra.mxu0 0.0
    %117 = vmatprep.subr.mxu0 0.0
    %118 = vmatpush1.msra.mxu0 0.0
    %119 = vmatprep.subr.mxu0 0.0
    %120 = vmatpush1.msra.mxu0 0.0
    %121 = vmatprep.subr.mxu0 0.0
    %122 = vmatpush1.msra.mxu0 0.0
    %123 = vmatprep.subr.mxu0 0.0
    %124 = vmatpush1.msra.mxu0 0.0
    %125 = vmatprep.subr.mxu0 0.0
    %126 = vmatpush1.msra.mxu0 0.0
    %127 = vmatprep.subr.mxu0 0.0
    %128 = vmatpush1.msra.mxu0 0.0
    %129 = vmatprep.subr.mxu0 0.0
    %130 = vmatpush1.msra.mxu0 0.0
    %131 = vmatprep.subr.mxu0 0.0
    %132 = vmatpush1.msra.mxu0 0.0
    %133 = vmatprep.subr.mxu0 0.0
    %134 = vmatpush1.msra.mxu0 0.0
    %135 = vmatprep.subr.mxu0 0.0
    %136 = vmatpush1.msra.mxu0 0.0
    %137 = vmatprep.subr.mxu0 0.0
    %138 = vmatpush1.msra.mxu0 0.0
    %139 = vmatprep.subr.mxu0 0.0
    %140 = vmatpush1.msra.mxu0 0.0
    %141 = vmatprep.subr.mxu0 0.0
    %142 = vmatpush1.msra.mxu0 0.0
    %143 = vmatprep.mubr.f32.mxu0 0.0
    %144 = vmatmul.mubr.f32.gmra.mrb[0].mxu0 %v73
    %v145 = vpop.f32.mrb[0].mxu0
    %v146 = vadd.f32 %v66, %v145
    %v147 = vpop.f32.mrb[0].mxu0
    %148 = vdwg.mxu0
    %v149 = vmax.f32 %v146, 0.0
    %v151 = vlaneseq
    %v152 = vshrl.u32 %v151, 7
    %v153 = vsub.s32 0, %v152
    %v154 = vrot.slane %v68, %v153
    %v155 = vlaneseq
    %v156 = vshrl.u32 %v155, 7
    %v157 = vsub.s32 1, %v156
    %v158 = vrot.slane %v68, %v157
    %vm161 = vcmask 203776
    %v163 = vsel %vm161, %v149, 0
    %vm165 = vcmask 1040384
    %v167 = vsel %vm165, %v33, 0
    %v170 = vsel %vm165, %v34, 0
    %172 = vmatprep.subr.mxu0 %v28
    %173 = vmatpush1.msra.mxu0 %v27
    %174 = vmatprep.subr.mxu0 %v30
    %175 = vmatpush1.msra.mxu0 %v29
    %176 = vmatprep.subr.mxu0 %v32
    %177 = vmatpush1.msra.mxu0 %v31
    %178 = vmatprep.subr.mxu0 %v170
    %179 = vmatpush1.msra.mxu0 %v167
    %180 = vmatprep.subr.mxu0 0.0
    %181 = vmatpush1.msra.mxu0 0.0
    %182 = vmatprep.subr.mxu0 0.0
    %183 = vmatpush1.msra.mxu0 0.0
    %184 = vmatprep.subr.mxu0 0.0
    %185 = vmatpush1.msra.mxu0 0.0
    %186 = vmatprep.subr.mxu0 0.0
    %187 = vmatpush1.msra.mxu0 0.0
    %188 = vmatprep.subr.mxu0 0.0
    %189 = vmatpush1.msra.mxu0 0.0
    %190 = vmatprep.subr.mxu0 0.0
    %191 = vmatpush1.msra.mxu0 0.0
    %192 = vmatprep.subr.mxu0 0.0
    %193 = vmatpush1.msra.mxu0 0.0
    %194 = vmatprep.subr.mxu0 0.0
    %195 = vmatpush1.msra.mxu0 0.0
    %196 = vmatprep.subr.mxu0 0.0
    %197 = vmatpush1.msra.mxu0 0.0
    %198 = vmatprep.subr.mxu0 0.0
    %199 = vmatpush1.msra.mxu0 0.0
    %200 = vmatprep.subr.mxu0 0.0
    %201 = vmatpush1.msra.mxu0 0.0
    %202 = vmatprep.subr.mxu0 0.0
    %203 = vmatpush1.msra.mxu0 0.0
    %204 = vmatprep.subr.mxu0 0.0
    %205 = vmatpush1.msra.mxu0 0.0
    %206 = vmatprep.subr.mxu0 0.0
    %207 = vmatpush1.msra.mxu0 0.0
    %208 = vmatprep.subr.mxu0 0.0
    %209 = vmatpush1.msra.mxu0 0.0
    %210 = vmatprep.subr.mxu0 0.0
    %211 = vmatpush1.msra.mxu0 0.0
    %212 = vmatprep.subr.mxu0 0.0
    %213 = vmatpush1.msra.mxu0 0.0
    %214 = vmatprep.subr.mxu0 0.0
    %215 = vmatpush1.msra.mxu0 0.0
    %216 = vmatprep.subr.mxu0 0.0
    %217 = vmatpush1.msra.mxu0 0.0
    %218 = vmatprep.subr.mxu0 0.0
    %219 = vmatpush1.msra.mxu0 0.0
    %220 = vmatprep.subr.mxu0 0.0
    %221 = vmatpush1.msra.mxu0 0.0
    %222 = vmatprep.subr.mxu0 0.0
    %223 = vmatpush1.msra.mxu0 0.0
    %224 = vmatprep.subr.mxu0 0.0
    %225 = vmatpush1.msra.mxu0 0.0
    %226 = vmatprep.subr.mxu0 0.0
    %227 = vmatpush1.msra.mxu0 0.0
    %228 = vmatprep.subr.mxu0 0.0
    %229 = vmatpush1.msra.mxu0 0.0
    %230 = vmatprep.subr.mxu0 0.0
    %231 = vmatpush1.msra.mxu0 0.0
    %232 = vmatprep.subr.mxu0 0.0
    %233 = vmatpush1.msra.mxu0 0.0
    %234 = vmatprep.subr.mxu0 0.0
    %235 = vmatpush1.msra.mxu0 0.0
    %236 = vmatprep.mubr.f32.mxu0 0.0
    %237 = vmatmul.mubr.f32.gmra.mrb[0].mxu0 %v163
    %v238 = vpop.f32.mrb[0].mxu0
    %v239 = vadd.f32 %v154, %v238
    %v240 = vpop.f32.mrb[0].mxu0
    %v241 = vadd.f32 %v158, %v240
    %242 = vdwg.mxu0
    %v243 = vmax.f32 %v239, 0.0
    %v244 = vmax.f32 %v241, 0.0
    %vm245 = vcmask 793600
    %v247 = vsel %vm245, %v244, 0
    %v250 = vsel %vm165, %v63, 0
    %252 = vmatprep.subr.mxu0 0.0
    %253 = vmatpush1.msra.mxu0 %v35
    %254 = vmatprep.subr.mxu0 0.0
    %255 = vmatpush1.msra.mxu0 %v36
    %256 = vmatprep.subr.mxu0 0.0
    %257 = vmatpush1.msra.mxu0 %v37
    %258 = vmatprep.subr.mxu0 0.0
    %259 = vmatpush1.msra.mxu0 %v38
    %260 = vmatprep.subr.mxu0 0.0
    %261 = vmatpush1.msra.mxu0 %v39
    %262 = vmatprep.subr.mxu0 0.0
    %263 = vmatpush1.msra.mxu0 %v40
    %264 = vmatprep.subr.mxu0 0.0
    %265 = vmatpush1.msra.mxu0 %v41
    %266 = vmatprep.subr.mxu0 0.0
    %267 = vmatpush1.msra.mxu0 %v42
    %268 = vmatprep.subr.mxu0 0.0
    %269 = vmatpush1.msra.mxu0 %v43
    %270 = vmatprep.subr.mxu0 0.0
    %271 = vmatpush1.msra.mxu0 %v44
    %272 = vmatprep.subr.mxu0 0.0
    %273 = vmatpush1.msra.mxu0 %v45
    %274 = vmatprep.subr.mxu0 0.0
    %275 = vmatpush1.msra.mxu0 %v46
    %276 = vmatprep.subr.mxu0 0.0
    %277 = vmatpush1.msra.mxu0 %v47
    %278 = vmatprep.subr.mxu0 0.0
    %279 = vmatpush1.msra.mxu0 %v48
    %280 = vmatprep.subr.mxu0 0.0
    %281 = vmatpush1.msra.mxu0 %v49
    %282 = vmatprep.subr.mxu0 0.0
    %283 = vmatpush1.msra.mxu0 %v50
    %284 = vmatprep.subr.mxu0 0.0
    %285 = vmatpush1.msra.mxu0 %v51
    %286 = vmatprep.subr.mxu0 0.0
    %287 = vmatpush1.msra.mxu0 %v52
    %288 = vmatprep.subr.mxu0 0.0
    %289 = vmatpush1.msra.mxu0 %v53
    %290 = vmatprep.subr.mxu0 0.0
    %291 = vmatpush1.msra.mxu0 %v54
    %292 = vmatprep.subr.mxu0 0.0
    %293 = vmatpush1.msra.mxu0 %v55
    %294 = vmatprep.subr.mxu0 0.0
    %295 = vmatpush1.msra.mxu0 %v56
    %296 = vmatprep.subr.mxu0 0.0
    %297 = vmatpush1.msra.mxu0 %v57
    %298 = vmatprep.subr.mxu0 0.0
    %299 = vmatpush1.msra.mxu0 %v58
    %300 = vmatprep.subr.mxu0 0.0
    %301 = vmatpush1.msra.mxu0 %v59
    %302 = vmatprep.subr.mxu0 0.0
    %303 = vmatpush1.msra.mxu0 %v60
    %304 = vmatprep.subr.mxu0 0.0
    %305 = vmatpush1.msra.mxu0 %v61
    %306 = vmatprep.subr.mxu0 0.0
    %307 = vmatpush1.msra.mxu0 %v62
    %308 = vmatprep.subr.mxu0 0.0
    %309 = vmatpush1.msra.mxu0 %v250
    %310 = vmatprep.subr.mxu0 0.0
    %311 = vmatpush1.msra.mxu0 0.0
    %312 = vmatprep.subr.mxu0 0.0
    %313 = vmatpush1.msra.mxu0 0.0
    %314 = vmatprep.subr.mxu0 0.0
    %315 = vmatpush1.msra.mxu0 0.0
    %316 = vmatprep.mubr.f32.mxu0 %v247
    %317 = vmatmul.mubr.f32.gmra.mrb[0].mxu0 %v243
    %v318 = vpop.f32.mrb[0].mxu0
    %v319 = vadd.f32 %v69, %v318
    %v320 = vpop.f32.mrb[0].mxu0
    %321 = vdwg.mxu0
    %v322 = vtanh.pop %v319
    %vm323 = vcmask 72704
    %v325 = vsel %vm323, %v322, 0
    %v328 = vsel %vm165, %v65, 0
    %330 = vmatprep.subr.mxu0 0.0
    %331 = vmatpush1.msra.mxu0 %v64
    %332 = vmatprep.subr.mxu0 0.0
    %333 = vmatpush1.msra.mxu0 %v328
    %334 = vmatprep.subr.mxu0 0.0
    %335 = vmatpush1.msra.mxu0 0.0
    %336 = vmatprep.subr.mxu0 0.0
    %337 = vmatpush1.msra.mxu0 0.0
    %338 = vmatprep.subr.mxu0 0.0
    %339 = vmatpush1.msra.mxu0 0.0
    %340 = vmatprep.subr.mxu0 0.0
    %341 = vmatpush1.msra.mxu0 0.0
    %342 = vmatprep.subr.mxu0 0.0
    %343 = vmatpush1.msra.mxu0 0.0
    %344 = vmatprep.subr.mxu0 0.0
    %345 = vmatpush1.msra.mxu0 0.0
    %346 = vmatprep.subr.mxu0 0.0
    %347 = vmatpush1.msra.mxu0 0.0
    %348 = vmatprep.subr.mxu0 0.0
    %349 = vmatpush1.msra.mxu0 0.0
    %350 = vmatprep.subr.mxu0 0.0
    %351 = vmatpush1.msra.mxu0 0.0
    %352 = vmatprep.subr.mxu0 0.0
    %353 = vmatpush1.msra.mxu0 0.0
    %354 = vmatprep.subr.mxu0 0.0
    %355 = vmatpush1.msra.mxu0 0.0
    %356 = vmatprep.subr.mxu0 0.0
    %357 = vmatpush1.msra.mxu0 0.0
    %358 = vmatprep.subr.mxu0 0.0
    %359 = vmatpush1.msra.mxu0 0.0
    %360 = vmatprep.subr.mxu0 0.0
    %361 = vmatpush1.msra.mxu0 0.0
    %362 = vmatprep.subr.mxu0 0.0
    %363 = vmatpush1.msra.mxu0 0.0
    %364 = vmatprep.subr.mxu0 0.0
    %365 = vmatpush1.msra.mxu0 0.0
    %366 = vmatprep.subr.mxu0 0.0
    %367 = vmatpush1.msra.mxu0 0.0
    %368 = vmatprep.subr.mxu0 0.0
    %369 = vmatpush1.msra.mxu0 0.0
    %370 = vmatprep.subr.mxu0 0.0
    %371 = vmatpush1.msra.mxu0 0.0
    %372 = vmatprep.subr.mxu0 0.0
    %373 = vmatpush1.msra.mxu0 0.0
    %374 = vmatprep.subr.mxu0 0.0
    %375 = vmatpush1.msra.mxu0 0.0
    %376 = vmatprep.subr.mxu0 0.0
    %377 = vmatpush1.msra.mxu0 0.0
    %378 = vmatprep.subr.mxu0 0.0
    %379 = vmatpush1.msra.mxu0 0.0
    %380 = vmatprep.subr.mxu0 0.0
    %381 = vmatpush1.msra.mxu0 0.0
    %382 = vmatprep.subr.mxu0 0.0
    %383 = vmatpush1.msra.mxu0 0.0
    %384 = vmatprep.subr.mxu0 0.0
    %385 = vmatpush1.msra.mxu0 0.0
    %386 = vmatprep.subr.mxu0 0.0
    %387 = vmatpush1.msra.mxu0 0.0
    %388 = vmatprep.subr.mxu0 0.0
    %389 = vmatpush1.msra.mxu0 0.0
    %390 = vmatprep.subr.mxu0 0.0
    %391 = vmatpush1.msra.mxu0 0.0
    %392 = vmatprep.subr.mxu0 0.0
    %393 = vmatpush1.msra.mxu0 0.0
    %394 = vmatprep.mubr.f32.mxu0 0.0
    %395 = vmatmul.mubr.f32.gmra.mrb[0].mxu0 %v325
    %v396 = vpop.f32.mrb[0].mxu0
    %v397 = vadd.f32 %v70, %v396
    %v398 = vpop.f32.mrb[0].mxu0
    %399 = vdwg.mxu0
    %v400 = vlaneseq
    %v401 = vand.u32 %v400, 127
    %vm402 = vcmp.lt.s32.totalorder %v401, 4
    %vm403 = vcmp.ge.s32.totalorder %v401, 8
    %v404 = vsel %vm402, %v397, -1e+30
    %vm405 = vcmask 97280
    %v406 = vsel %vm405, %v404, -inf
    %407 = vmax.xlane.f32.xlu0 %v406
    %v408 = vpop.xlane.xlu0 %407
    %v409 = vsub.f32 %v397, %v408
    %v410 = vsel %vm402, %v409, -1e+30
    %v411 = vmul.f32 %v410, 1.442695
    %v412 = vpow.pop %v411
    %v413 = vsel %vm405, %v412, 0.0
    %414 = vadd.xlane.f32.xlu0 %v413
    %v415 = vpop.xlane.xlu0 %414
    %v416 = vrcp.pop %v415
    %v417 = vmul.f32 %v412, %v416
    %v418 = vmul.f32 %v397, 1.442695
    %v419 = vpow.pop %v418
    %v420 = vsel %vm403, %v419, %v397
    %v421 = vsel %vm402, %v417, %v420
    %v422 = vsel %vm405, %v421, 0.0
    %v423 = vrot.slane %v422, 4
    %v424 = vadd.f32 %v422, %v423
    %v425 = vrot.slane %v424, 2
    %v426 = vadd.f32 %v424, %v425
    %v427 = vrot.slane %v426, 1
    %v428 = vadd.f32 %v426, %v427
    %v429 = vrcp.pop 8.0
    %v430 = vmul.f32 %v428, %v429
    %vm431 = vcmask 90112
    %432 = vst.msk [vmem:[%s2] sm:$0x1] %vm431, %v430
    // Predicated region
    $region14: #{mlp_forward.1} parent=1 // pred_check
      _
    $region15: #{mlp_forward.1} parent=1 // pred_check_branch
      %434 = sbr.rel (0) target = $region17
    $region16: #{mlp_forward.1} parent=1 // pred_region
      _
    $region17: #{mlp_forward.1} parent=1 // pred_fallthru
      _
    // Predicated region
    $region18: #{mlp_forward.1} parent=1 // pred_check
      _
    $region19: #{mlp_forward.1} parent=1 // pred_check_branch
      %436 = sbr.rel (0) target = $region21
    $region20: #{mlp_forward.1} parent=1 // pred_region
      _
    $region21: #{mlp_forward.1} parent=1 // pred_fallthru
      _
    %437 = vsyncpa [#allocation3], 1

</llo_original>
